<compile_context>
chip_gen: v7x
topology: tpu7x:2x2x1
jax: 0.10.0
libtpu: 0.0.40
codegen_flags: <defaults>
</compile_context>

<pallas_src>
import functools

import jax
import jax.numpy as jnp
from jax.experimental import pallas as pl
from jax.experimental.pallas import tpu as pltpu


def _pa_kernel(x_ref, w1t_ref, b1_ref, w2_ref, b2_ref, o_ref):
    # x_ref  : (C, TS)   one batch element's spatial tile (channels on sublanes)
    # w1t_ref: (Cm, C)   first 1x1 conv weight, transposed (x's dtype)
    # b1_ref : (Cm, 1)   first bias, f32 (broadcasts over lanes)
    # w2_ref : (Cm, 1)   second 1x1 conv weight (column), f32
    # b2_ref : (1,)      second bias, SMEM scalar, f32
    # o_ref  : (C, TS)
    #
    # conv1 (1x1) on the MXU; feed x in its native dtype, accumulate in f32.
    h = jnp.dot(w1t_ref[...], x_ref[...], preferred_element_type=jnp.float32)
    h = jnp.maximum(h + b1_ref[...], 0.0)

    # conv2 (Cm -> 1) as a sublane reduction + bias + sigmoid, kept in f32.
    y = jnp.sum(h * w2_ref[...], axis=0, keepdims=True) + b2_ref[0]
    y = jax.nn.sigmoid(y)

    # Broadcast multiply over the channel (sublane) axis in x's native dtype;
    # only the 1-row attention vector is cast, never the (C, TS) tile.
    o_ref[...] = x_ref[...] * y.astype(o_ref.dtype)


def _tpu_vmem_capacity_bytes():
    try:
        return int(pltpu.get_tpu_info().vmem_capacity_bytes)
    except Exception:
        return 128 << 20  # assume v5e/v6e-class part if query unavailable


def _choose_tile_spatial(C, Cm, S, itemsize, io_budget_bytes):
    # Per-lane VMEM bytes: x + out, double-buffered (4 * C * itemsize), plus
    # f32 temporaries h (Cm rows) and y (1 row) with a little slack.
    per_lane = 4 * C * itemsize + 4 * (Cm + 2)
    ts = io_budget_bytes // per_lane
    if ts >= S:
        return S                      # whole spatial extent in one block
    floor = 512 if S >= 512 else 128  # >=512 lanes keeps us near HBM roofline
    ts = max(floor, (ts // 128) * 128)
    return S if ts >= S else ts


@functools.partial(jax.jit, static_argnames=("tile_spatial",))
def pa_layer(x_nchw, w1, b1, w2, b2, *, tile_spatial=None):
    """x_nchw: (N, C, H, W). w1: (C, C//8), b1: (C//8,), w2: (C//8, 1), b2: (1,)."""
    N, C, H, W = x_nchw.shape
    Cm = w1.shape[1]
    assert w1.shape == (C, Cm) and w2.shape == (Cm, 1)
    S = H * W

    x = x_nchw.reshape(N, C, S)  # contiguous view: no transpose, no copy
    itemsize = jnp.dtype(x.dtype).itemsize

    # Generation-aware tiling policy.
    vmem_cap_hw = _tpu_vmem_capacity_bytes()
    is_small_vmem = vmem_cap_hw <= (64 << 20)   # v7x: 64 MiB / TC, 3.2 TB/s HBM
    if is_small_vmem:
        io_budget = 20 << 20                    # big tiles amortize per-step overhead
        vmem_cap = 44 << 20                     # leave headroom on the 64 MiB part
    else:                                       # v5e / v6e: 128 MiB physical VMEM
        io_budget = 28 << 20
        vmem_cap = 64 << 20

    if tile_spatial is not None:
        TS = S if tile_spatial >= S else max(128, (tile_spatial // 128) * 128)
    else:
        TS = _choose_tile_spatial(C, Cm, S, itemsize, io_budget)
    n_s = pl.cdiv(S, TS)  # ragged tail handled by block masking

    # Megacore balance (v7x has 2 TCs): avoid a degenerate 1x1 grid.
    if is_small_vmem and N == 1 and n_s == 1 and S >= 1024:
        TS = max(512, ((S // 2) // 128) * 128)
        n_s = pl.cdiv(S, TS)

    # Tiny parameter reshapes/casts (fused under jit; negligible traffic).
    w1t = jnp.transpose(w1).astype(x.dtype)        # (Cm, C) -> MXU, same dtype as x
    b1c = b1.reshape(Cm, 1).astype(jnp.float32)    # (Cm, 1)
    w2c = w2.reshape(Cm, 1).astype(jnp.float32)    # (Cm, 1)
    b2s = b2.reshape(1).astype(jnp.float32)        # (1,) scalar -> SMEM

    # Explicit VMEM limit with headroom, capped per generation.
    est = (4 * C * TS * itemsize                   # x/out double buffers
           + (2 * Cm * TS + 2 * TS) * 4            # h / y f32 temporaries
           + (Cm * C * itemsize + 8 * Cm))         # weights / biases
    vmem_limit = int(min(vmem_cap, max(16 << 20, 2 * est)))

    # TODO(synk): on v7x, sweep pipeline_mode=pl.Buffered(3) on the x in_spec
    # (DMA-issue bound regime); default double-buffering is kept here.
    out = pl.pallas_call(
        _pa_kernel,
        out_shape=jax.ShapeDtypeStruct((N, C, S), x.dtype),
        grid_spec=pltpu.PrefetchScalarGridSpec(
            num_scalar_prefetch=0,
            grid=(N, n_s),
            in_specs=[
                pl.BlockSpec((None, C, TS), lambda n, s: (n, 0, s)),
                pl.BlockSpec((Cm, C), lambda n, s: (0, 0)),
                pl.BlockSpec((Cm, 1), lambda n, s: (0, 0)),
                pl.BlockSpec((Cm, 1), lambda n, s: (0, 0)),
                pl.BlockSpec(memory_space=pltpu.MemorySpace.SMEM),
            ],
            out_specs=pl.BlockSpec((None, C, TS), lambda n, s: (n, 0, s)),
        ),
        compiler_params=pltpu.CompilerParams(
            dimension_semantics=("parallel", "parallel"),
            vmem_limit_bytes=vmem_limit),
    )(x, w1t, b1c, w2c, b2s)

    return out.reshape(N, C, H, W)


def _reference(x_nchw, w1, b1, w2, b2):
    # Pure-JAX reference of the PyTorch forward (1x1 convs as channel matmuls).
    x = x_nchw.astype(jnp.float32)
    h = jnp.einsum('nchw,cm->nmhw', x, w1.astype(jnp.float32))
    h = jnp.maximum(h + b1.astype(jnp.float32)[None, :, None, None], 0.0)
    y = jnp.einsum('nmhw,mo->nohw', h, w2.astype(jnp.float32))
    y = jax.nn.sigmoid(y + b2.astype(jnp.float32)[None, :, None, None])
    return (x * y).astype(x_nchw.dtype)


if __name__ == "__main__":
    key = jax.random.PRNGKey(0)
    N, C, H, W = 2, 64, 16, 16          # channel must be divisible by 8
    Cm = C // 8

    k_x, k_w1, k_b1, k_w2, k_b2 = jax.random.split(key, 5)
    x = jax.random.normal(k_x, (N, C, H, W), dtype=jnp.float32)
    # PyTorch conv weights (out, in, 1, 1) are represented here directly as
    # (in, out) matrices.
    w1 = jax.random.normal(k_w1, (C, Cm), dtype=jnp.float32) * 0.1
    b1 = jax.random.normal(k_b1, (Cm,), dtype=jnp.float32) * 0.1
    w2 = jax.random.normal(k_w2, (Cm, 1), dtype=jnp.float32) * 0.1
    b2 = jax.random.normal(k_b2, (1,), dtype=jnp.float32) * 0.1

    out = pa_layer(x, w1, b1, w2, b2)
    jax.block_until_ready(out)

    ref = _reference(x, w1, b1, w2, b2)
    assert out.shape == x.shape
    assert jnp.allclose(out, ref, atol=1e-5, rtol=1e-4)
    print("KERNEL_OK")
</pallas_src>

<mosaic_0001>
module attributes {stable_mosaic.version = 11 : i64} {
  func.func @_pa_kernel(%arg0: i32, %arg1: i32, %arg2: memref<1x64x256xf32, #tpu.memory_space<vmem>>, %arg3: memref<8x64xf32, #tpu.memory_space<vmem>>, %arg4: memref<8x1xf32, #tpu.memory_space<vmem>>, %arg5: memref<8x1xf32, #tpu.memory_space<vmem>>, %arg6: memref<1xf32, #tpu.memory_space<smem>>, %arg7: memref<1x64x256xf32, #tpu.memory_space<vmem>>) attributes {dimension_semantics = [#tpu.dimension_semantics<parallel>, #tpu.dimension_semantics<parallel>], iteration_bounds = array<i64: 2, 1>, scalar_prefetch = 0 : i64, scratch_operands = 0 : i64, tpu.core_type = #tpu.core_type<tc>, window_params = [{transform_indices = @transform_0, window_bounds = array<i64: 1, 64, 256>}, {pipeline_mode = #tpu.pipeline_mode<synchronous>, transform_indices = @transform_1, window_bounds = array<i64: 8, 64>}, {pipeline_mode = #tpu.pipeline_mode<synchronous>, transform_indices = @transform_2, window_bounds = array<i64: 8, 1>}, {pipeline_mode = #tpu.pipeline_mode<synchronous>, transform_indices = @transform_3, window_bounds = array<i64: 8, 1>}, {transform_indices = @transform_4, window_bounds = array<i64: 1>}, {transform_indices = @transform_5, window_bounds = array<i64: 1, 64, 256>}]} {
    %c0 = arith.constant 0 : index
    %c0_0 = arith.constant 0 : index
    %0 = vector.load %arg3[%c0, %c0_0] : memref<8x64xf32, #tpu.memory_space<vmem>>, vector<8x64xf32>
    %c0_1 = arith.constant 0 : index
    %c0_2 = arith.constant 0 : index
    %c0_3 = arith.constant 0 : index
    %1 = vector.load %arg2[%c0_1, %c0_2, %c0_3] : memref<1x64x256xf32, #tpu.memory_space<vmem>>, vector<1x64x256xf32>
    %2 = vector.shape_cast %1 : vector<1x64x256xf32> to vector<64x256xf32>
    %cst = arith.constant dense<0.000000e+00> : vector<8x256xf32>
    %3 = tpu.matmul %0, %2, %cst {dimension_numbers = #tpu.dot_dimension_numbers<[1], [0], [0], [1], [0, 0, 1, 1], [], []>} : vector<8x64xf32>, vector<64x256xf32>, vector<8x256xf32> -> vector<8x256xf32>
    %c0_4 = arith.constant 0 : index
    %c0_5 = arith.constant 0 : index
    %4 = vector.load %arg4[%c0_4, %c0_5] : memref<8x1xf32, #tpu.memory_space<vmem>>, vector<8x1xf32>
    %5 = vector.broadcast %4 : vector<8x1xf32> to vector<8x256xf32>
    %6 = arith.addf %3, %5 : vector<8x256xf32>
    %cst_6 = arith.constant 0.000000e+00 : f32
    %7 = vector.broadcast %cst_6 : f32 to vector<8x256xf32>
    %8 = arith.maximumf %6, %7 : vector<8x256xf32>
    %c0_7 = arith.constant 0 : index
    %c0_8 = arith.constant 0 : index
    %9 = vector.load %arg5[%c0_7, %c0_8] : memref<8x1xf32, #tpu.memory_space<vmem>>, vector<8x1xf32>
    %10 = vector.broadcast %9 : vector<8x1xf32> to vector<8x256xf32>
    %11 = arith.mulf %8, %10 : vector<8x256xf32>
    %cst_9 = arith.constant dense<0.000000e+00> : vector<256xf32>
    %12 = vector.multi_reduction <add>, %11, %cst_9 [0] : vector<8x256xf32> to vector<256xf32>
    %13 = vector.shape_cast %12 : vector<256xf32> to vector<1x256xf32>
    %c0_10 = arith.constant 0 : index
    %14 = memref.load %arg6[%c0_10] : memref<1xf32, #tpu.memory_space<smem>>
    %15 = vector.broadcast %14 : f32 to vector<1x256xf32>
    %16 = arith.addf %13, %15 : vector<1x256xf32>
    %17 = arith.negf %16 : vector<1x256xf32>
    %18 = math.exp %17 : vector<1x256xf32>
    %cst_11 = arith.constant 1.000000e+00 : f32
    %19 = vector.broadcast %cst_11 : f32 to vector<1x256xf32>
    %20 = arith.addf %19, %18 : vector<1x256xf32>
    %21 = arith.divf %19, %20 : vector<1x256xf32>
    %c0_12 = arith.constant 0 : index
    %c0_13 = arith.constant 0 : index
    %c0_14 = arith.constant 0 : index
    %22 = vector.load %arg2[%c0_12, %c0_13, %c0_14] : memref<1x64x256xf32, #tpu.memory_space<vmem>>, vector<1x64x256xf32>
    %23 = vector.shape_cast %22 : vector<1x64x256xf32> to vector<64x256xf32>
    %24 = vector.broadcast %21 : vector<1x256xf32> to vector<64x256xf32>
    %25 = arith.mulf %23, %24 : vector<64x256xf32>
    %c0_15 = arith.constant 0 : index
    %c0_16 = arith.constant 0 : index
    %c0_17 = arith.constant 0 : index
    %26 = vector.load %arg7[%c0_15, %c0_16, %c0_17] : memref<1x64x256xf32, #tpu.memory_space<vmem>>, vector<1x64x256xf32>
    %27 = vector.shape_cast %26 : vector<1x64x256xf32> to vector<64x256xf32>
    %28 = vector.shape_cast %25 : vector<64x256xf32> to vector<1x64x256xf32>
    tpu.vector_store %arg7[%c0_15, %c0_16, %c0_17], %28 {strides = array<i32>} : memref<1x64x256xf32, #tpu.memory_space<vmem>>, vector<1x64x256xf32>,
    return
  }
  func.func @transform_0(%arg0: i32, %arg1: i32) -> (i32, i32, i32) {
    %c0_i32 = arith.constant 0 : i32
    %c0_i32_0 = arith.constant 0 : i32
    return %arg0, %c0_i32, %arg1 : i32, i32, i32
  }
  func.func @transform_1(%arg0: i32, %arg1: i32) -> (i32, i32) {
    %c0_i32 = arith.constant 0 : i32
    %c0_i32_0 = arith.constant 0 : i32
    %c0_i32_1 = arith.constant 0 : i32
    return %c0_i32, %c0_i32_0 : i32, i32
  }
  func.func @transform_2(%arg0: i32, %arg1: i32) -> (i32, i32) {
    %c0_i32 = arith.constant 0 : i32
    %c0_i32_0 = arith.constant 0 : i32
    %c0_i32_1 = arith.constant 0 : i32
    return %c0_i32, %c0_i32_0 : i32, i32
  }
  func.func @transform_3(%arg0: i32, %arg1: i32) -> (i32, i32) {
    %c0_i32 = arith.constant 0 : i32
    %c0_i32_0 = arith.constant 0 : i32
    %c0_i32_1 = arith.constant 0 : i32
    return %c0_i32, %c0_i32_0 : i32, i32
  }
  func.func @transform_4(%arg0: i32, %arg1: i32) -> i32 {
    %c0_i32 = arith.constant 0 : i32
    %c0_i32_0 = arith.constant 0 : i32
    return %c0_i32 : i32
  }
  func.func @transform_5(%arg0: i32, %arg1: i32) -> (i32, i32, i32) {
    %c0_i32 = arith.constant 0 : i32
    %c0_i32_0 = arith.constant 0 : i32
    return %arg0, %c0_i32, %arg1 : i32, i32, i32
  }
}

</mosaic_0001>

<llo_original>
// kernel: pa_layer.1
$region0: #{pa_layer.1}
  #allocation0 [shape = 'u32[]', space=smem, size = 0x4, offset = 0x4, fixed_abs, tag = 'smem constant byte address 0x4 - core index']
  #allocation1 [shape = 'u32[144,128]{1,0:T(1,128)}', space=vmem, size = 0x12000, scoped, tag = 'internal scratch']
  #allocation2 [shape = 'f32[1]{0:T(128)S(6)}', space=smem, size = 0x200, scoped, tag = 'scoped memory for pa_layer.1']
  %s0 = inlined_call_operand.vmem [shape: f32[2,64,256], index: 0, kind: input, shape index: {}]
  %s1 = inlined_call_operand.vmem [shape: f32[8,64], index: 1, kind: input, shape index: {}]
  %s2 = inlined_call_operand.vmem [shape: f32[8,1], index: 2, kind: input, shape index: {}]
  %s3 = inlined_call_operand.vmem [shape: f32[8,1], index: 3, kind: input, shape index: {}]
  %s4 = inlined_call_operand.<no memory space> [shape: f32[1], index: 4, kind: input, shape index: {}]
  %s5 = inlined_call_operand.vmem [shape: f32[2,64,256], index: 5, kind: output, shape index: {}]
  %s6 = sld [smem:[#allocation0]]
  $region53: #{pa_layer.1} parent=0
    _
  %s8 = ssub.s32 1, %s6
  %s9 = scalar_select 0, %s8, %s6
  %10 = sst [smem:[#allocation2]] %s4
  loop: start=0, step=1, limit=4
  $region2: #{pa_layer.1} parent=0 // loop_pre_header
    _
  $region3: #{pa_layer.1} parent=0 // loop_header
    %s12 = sphi 0, %s16
    %p13 = scmp.ge.s32.totalorder %s12, 4
    %s19 = sphi 0, %s31
    %s20 = sphi 0, %s27
    %s21 = sphi 0, %s19
    %s22 = sphi 0, %s20
    %s23 = sphi 0, %s21
    %s24 = sphi 0, %s22
    %s36 = sphi 0, %s38
    %s39 = sphi 0, %s36
    %s40 = sphi 0, %s39
    %s56 = sphi 0, %s40
    %s60 = sphi 0, %s60
    %s62 = sphi 0, %s60
    %s63 = sphi 0, %s62
    %s77 = sphi 0, %s63
    %s81 = sphi 0, %s81
    %s83 = sphi 0, %s81
    %s84 = sphi 0, %s83
    %s98 = sphi 0, %s84
    %s102 = sphi 0, %s102
    %s104 = sphi 0, %s102
    %s105 = sphi 0, %s104
    %s119 = sphi 0, %s105
    %s123 = sphi 0, %s123
    %s125 = sphi 0, %s123
    %s126 = sphi 0, %s125
    %s140 = sphi 0, %s126
    %s148 = sphi 0, %s150
    %s151 = sphi 0, %s148
    %s152 = sphi 0, %s151
    %s168 = sphi 0, %s152
  $region4: #{pa_layer.1} parent=0 // loop_header_branch
    %15 = sbr.rel (%p13) target = $region8
  $region5: #{pa_layer.1} parent=0 // loop_body
    %s17 = ssub.s32 %s12, 1
    %s18 = ssub.s32 %s12, 2
    %s25 = sadd.s32 1, %s20
    %p26 = scmp.ge.s32.totalorder %s25, 1
    %s27 = scalar_select %p26, 0, %s25
    %s28 = sadd.s32 1, %s19
    %s29 = scalar_select %p26, %s28, %s19
    %p30 = scmp.ge.s32.totalorder %s29, 2
    %s31 = scalar_select %p30, 0, %s29
    %s32 = ssub.s32 %s19, %s31
    %s33 = ssub.s32 %s20, %s27
    %s34 = sor.u32 %s32, %s33
    %p35 = scmp.eq.s32.totalorder %s34, 0
    %s37 = sadd.s32 %s36, 1
    %s38 = scalar_select %p35, %s36, %s37
    %p41 = pneg %p35
    %p42 = scmp.eq.s32.totalorder %s12, 1
    %p43 = por %p41, %p42
    %p44 = scmp.ne.s32.totalorder %s36, %s39
    %p45 = scmp.eq.s32.totalorder %s12, 0
    %p46 = por %p44, %p45
    %p47 = scmp.ne.s32.totalorder %s36, %s39
    %p48 = scmp.eq.s32.totalorder %s17, 1
    %p49 = por %p47, %p48
    %p50 = scmp.ne.s32.totalorder %s39, %s40
    %p51 = scmp.eq.s32.totalorder %s17, 0
    %p52 = por %p50, %p51
    %p53 = scmp.ne.s32.totalorder %s39, %s40
    %p54 = scmp.eq.s32.totalorder %s18, 1
    %p55 = por %p53, %p54
    %p57 = scmp.ne.s32.totalorder %s40, %s56
    %p58 = scmp.eq.s32.totalorder %s18, 0
    %p59 = por %p57, %p58
    %s61 = sadd.s32 %s60, 1
    %p64 = scmp.eq.s32.totalorder %s12, 1
    %p65 = scmp.ne.s32.totalorder %s60, %s62
    %p66 = scmp.eq.s32.totalorder %s12, 0
    %p67 = por %p65, %p66
    %p68 = scmp.ne.s32.totalorder %s60, %s62
    %p69 = scmp.eq.s32.totalorder %s17, 1
    %p70 = por %p68, %p69
    %p71 = scmp.ne.s32.totalorder %s62, %s63
    %p72 = scmp.eq.s32.totalorder %s17, 0
    %p73 = por %p71, %p72
    %p74 = scmp.ne.s32.totalorder %s62, %s63
    %p75 = scmp.eq.s32.totalorder %s18, 1
    %p76 = por %p74, %p75
    %p78 = scmp.ne.s32.totalorder %s63, %s77
    %p79 = scmp.eq.s32.totalorder %s18, 0
    %p80 = por %p78, %p79
    %s82 = sadd.s32 %s81, 1
    %p85 = scmp.eq.s32.totalorder %s12, 1
    %p86 = scmp.ne.s32.totalorder %s81, %s83
    %p87 = scmp.eq.s32.totalorder %s12, 0
    %p88 = por %p86, %p87
    %p89 = scmp.ne.s32.totalorder %s81, %s83
    %p90 = scmp.eq.s32.totalorder %s17, 1
    %p91 = por %p89, %p90
    %p92 = scmp.ne.s32.totalorder %s83, %s84
    %p93 = scmp.eq.s32.totalorder %s17, 0
    %p94 = por %p92, %p93
    %p95 = scmp.ne.s32.totalorder %s83, %s84
    %p96 = scmp.eq.s32.totalorder %s18, 1
    %p97 = por %p95, %p96
    %p99 = scmp.ne.s32.totalorder %s84, %s98
    %p100 = scmp.eq.s32.totalorder %s18, 0
    %p101 = por %p99, %p100
    %s103 = sadd.s32 %s102, 1
    %p106 = scmp.eq.s32.totalorder %s12, 1
    %p107 = scmp.ne.s32.totalorder %s102, %s104
    %p108 = scmp.eq.s32.totalorder %s12, 0
    %p109 = por %p107, %p108
    %p110 = scmp.ne.s32.totalorder %s102, %s104
    %p111 = scmp.eq.s32.totalorder %s17, 1
    %p112 = por %p110, %p111
    %p113 = scmp.ne.s32.totalorder %s104, %s105
    %p114 = scmp.eq.s32.totalorder %s17, 0
    %p115 = por %p113, %p114
    %p116 = scmp.ne.s32.totalorder %s104, %s105
    %p117 = scmp.eq.s32.totalorder %s18, 1
    %p118 = por %p116, %p117
    %p120 = scmp.ne.s32.totalorder %s105, %s119
    %p121 = scmp.eq.s32.totalorder %s18, 0
    %p122 = por %p120, %p121
    %s124 = sadd.s32 %s123, 1
    %p127 = scmp.eq.s32.totalorder %s12, 1
    %p128 = scmp.ne.s32.totalorder %s123, %s125
    %p129 = scmp.eq.s32.totalorder %s12, 0
    %p130 = por %p128, %p129
    %p131 = scmp.ne.s32.totalorder %s123, %s125
    %p132 = scmp.eq.s32.totalorder %s17, 1
    %p133 = por %p131, %p132
    %p134 = scmp.ne.s32.totalorder %s125, %s126
    %p135 = scmp.eq.s32.totalorder %s17, 0
    %p136 = por %p134, %p135
    %p137 = scmp.ne.s32.totalorder %s125, %s126
    %p138 = scmp.eq.s32.totalorder %s18, 1
    %p139 = por %p137, %p138
    %p141 = scmp.ne.s32.totalorder %s126, %s140
    %p142 = scmp.eq.s32.totalorder %s18, 0
    %p143 = por %p141, %p142
    %s144 = ssub.s32 %s19, %s31
    %s145 = ssub.s32 %s20, %s27
    %s146 = sor.u32 %s144, %s145
    %p147 = scmp.eq.s32.totalorder %s146, 0
    %s149 = sadd.s32 %s148, 1
    %s150 = scalar_select %p147, %s148, %s149
    %p153 = pneg %p147
    %p154 = scmp.eq.s32.totalorder %s12, 1
    %p155 = por %p153, %p154
    %p156 = scmp.ne.s32.totalorder %s148, %s151
    %p157 = scmp.eq.s32.totalorder %s12, 0
    %p158 = por %p156, %p157
    %p159 = scmp.ne.s32.totalorder %s148, %s151
    %p160 = scmp.eq.s32.totalorder %s17, 1
    %p161 = por %p159, %p160
    %p162 = scmp.ne.s32.totalorder %s151, %s152
    %p163 = scmp.eq.s32.totalorder %s17, 0
    %p164 = por %p162, %p163
    %p165 = scmp.ne.s32.totalorder %s151, %s152
    %p166 = scmp.eq.s32.totalorder %s18, 1
    %p167 = por %p165, %p166
    %p169 = scmp.ne.s32.totalorder %s152, %s168
    %p170 = scmp.eq.s32.totalorder %s18, 0
    %p171 = por %p169, %p170
    %p172 = scmp.le.s32.totalorder 1, %s12
    %p173 = scmp.lt.s32.totalorder %s12, 3
    %p174 = pnand %p172, %p173
    %p175 = pneg %p174
    // Predicated region
    $region9: #{pa_layer.1} parent=5 // pred_check
      _
    $region10: #{pa_layer.1} parent=5 // pred_check_branch
      %177 = sbr.rel (%p174) target = $region12
    $region11: #{pa_layer.1} parent=5 // pred_region
      %s178 = ssub.s32 %s12, 1
      // Predicated region
      $region13: #{pa_layer.1} parent=11 // pred_check
        %p179 = pneg %p73
      $region14: #{pa_layer.1} parent=11 // pred_check_branch
        %181 = sbr.rel (%p179) target = $region16
      $region15: #{pa_layer.1} parent=11 // pred_region
        _
      $region16: #{pa_layer.1} parent=11 // pred_fallthru
        _
      // Predicated region
      $region17: #{pa_layer.1} parent=11 // pred_check
        %p182 = pneg %p94
      $region18: #{pa_layer.1} parent=11 // pred_check_branch
        %184 = sbr.rel (%p182) target = $region20
      $region19: #{pa_layer.1} parent=11 // pred_region
        _
      $region20: #{pa_layer.1} parent=11 // pred_fallthru
        _
      // Predicated region
      $region21: #{pa_layer.1} parent=11 // pred_check
        %p185 = pneg %p115
      $region22: #{pa_layer.1} parent=11 // pred_check_branch
        %187 = sbr.rel (%p185) target = $region24
      $region23: #{pa_layer.1} parent=11 // pred_region
        _
      $region24: #{pa_layer.1} parent=11 // pred_fallthru
        _
      // Predicated region
      $region25: #{pa_layer.1} parent=11 // pred_check
        %p188 = pneg %p136
      $region26: #{pa_layer.1} parent=11 // pred_check_branch
        %190 = sbr.rel (%p188) target = $region28
      $region27: #{pa_layer.1} parent=11 // pred_region
        _
      $region28: #{pa_layer.1} parent=11 // pred_fallthru
        _
    $region12: #{pa_layer.1} parent=5 // pred_fallthru
      _
    %p191 = scmp.lt.s32.totalorder %s12, 2
    // Predicated region
    $region29: #{pa_layer.1} parent=5 // pred_check
      %p192 = pneg %p191
    $region30: #{pa_layer.1} parent=5 // pred_check_branch
      %194 = sbr.rel (%p192) target = $region32
    $region31: #{pa_layer.1} parent=5 // pred_region
      // Predicated region
      $region33: #{pa_layer.1} parent=31 // pred_check
        %p195 = pneg %p46
      $region34: #{pa_layer.1} parent=31 // pred_check_branch
        %197 = sbr.rel (%p195) target = $region36
      $region35: #{pa_layer.1} parent=31 // pred_region
        %s198 = smul.u32 2, %s20
        %p199 = scmp.lt.s32.totalorder %s19, 1
        %s200 = scalar_select %p199, %s19, 1
        %p201 = scmp.lt.s32.totalorder %s198, 1
        %s202 = scalar_select %p201, %s198, 1
        %s203 = smul.addr %s200, 16
        %s204 = sadd.s32 %s202, %s203
        %s205 = smul.addr %s204, 8
        %s206 = scalar_lea.vmem %s0, %s205
        %s207 = smul.u32 2, %s20
      $region36: #{pa_layer.1} parent=31 // pred_fallthru
        _
    $region32: #{pa_layer.1} parent=5 // pred_fallthru
      _
    %p208 = scmp.le.s32.totalorder 1, %s12
    %p209 = scmp.lt.s32.totalorder %s12, 3
    %p210 = pnand %p208, %p209
    %p211 = pneg %p210
    // Predicated region
    $region37: #{pa_layer.1} parent=5 // pred_check
      _
    $region38: #{pa_layer.1} parent=5 // pred_check_branch
      %213 = sbr.rel (%p210) target = $region40
    $region39: #{pa_layer.1} parent=5 // pred_region
      %s214 = ssub.s32 %s12, 1
      %s215 = smul.u32 2, %s22
      %p216 = scmp.lt.s32.totalorder %s21, 1
      %s217 = scalar_select %p216, %s21, 1
      %p218 = scmp.lt.s32.totalorder %s215, 1
      %s219 = scalar_select %p218, %s215, 1
      %s220 = smul.addr %s217, 16
      %s221 = sadd.s32 %s219, %s220
      %s222 = smul.addr %s221, 8
      %s223 = scalar_lea.vmem %s0, %s222
      %p224 = pneg %p52
      %p225 = pneg %p49
      %p226 = pneg %p73
      %p227 = pneg %p70
      %p228 = pneg %p94
      %p229 = pneg %p91
      %p230 = pneg %p115
      %p231 = pneg %p112
      %p232 = pneg %p136
      %p233 = pneg %p133
      %p234 = pneg %p164
      %p235 = pneg %p161
      %s236 = smul.u32 2, %s22
      %p237 = scmp.lt.s32.totalorder %s21, 1
      %s238 = scalar_select %p237, %s21, 1
      %p239 = scmp.lt.s32.totalorder %s236, 1
      %s240 = scalar_select %p239, %s236, 1
      %s241 = smul.addr %s238, 16
      %s242 = sadd.s32 %s240, %s241
      %s243 = smul.addr %s242, 8
      %s244 = scalar_lea.vmem %s5, %s243
      %s245 = smul.u32 2, %s22
      %p246 = scmp.lt.s32.totalorder %s21, 1
      %s247 = scalar_select %p246, %s21, 1
      %p248 = scmp.lt.s32.totalorder %s245, 1
      %s249 = scalar_select %p248, %s245, 1
      %s250 = smul.addr %s247, 16
      %s251 = sadd.s32 %s249, %s250
      %s252 = smul.addr %s251, 8
      %s253 = scalar_lea.vmem %s0, %s252
      %s254 = smul.u32 2, %s22
      %s255 = smul.u32 2, %s22
      %p256 = scmp.lt.s32.totalorder %s21, 1
      %s257 = scalar_select %p256, %s21, 1
      %p258 = scmp.lt.s32.totalorder %s255, 1
      %s259 = scalar_select %p258, %s255, 1
      %s260 = smul.addr %s257, 16
      %s261 = sadd.s32 %s259, %s260
      %s262 = smul.addr %s261, 8
      %s263 = scalar_lea.vmem %s5, %s262
      %s264 = smul.u32 2, %s22
      %v265 = vld [vmem:[%s1] sm:$0xff]
      %v266 = vld [vmem:[%s253] sm:$0xff]
      %v267 = vld [vmem:[%s253 + $0x8] sm:$0xff]
      %v268 = vld [vmem:[%s253 + $0x10] sm:$0xff]
      %v269 = vld [vmem:[%s253 + $0x18] sm:$0xff]
      %v270 = vld [vmem:[%s253 + $0x20] sm:$0xff]
      %v271 = vld [vmem:[%s253 + $0x28] sm:$0xff]
      %v272 = vld [vmem:[%s253 + $0x30] sm:$0xff]
      %v273 = vld [vmem:[%s253 + $0x38] sm:$0xff]
      %v274 = vld [vmem:[%s253 + $0x40] sm:$0xff]
      %v275 = vld [vmem:[%s253 + $0x48] sm:$0xff]
      %v276 = vld [vmem:[%s253 + $0x50] sm:$0xff]
      %v277 = vld [vmem:[%s253 + $0x58] sm:$0xff]
      %v278 = vld [vmem:[%s253 + $0x60] sm:$0xff]
      %v279 = vld [vmem:[%s253 + $0x68] sm:$0xff]
      %v280 = vld [vmem:[%s253 + $0x70] sm:$0xff]
      %v281 = vld [vmem:[%s253 + $0x78] sm:$0xff]
      %v282 = vld [vmem:[%s2] sm:$0xff]
      %284 = vset.pattern.permute.xlu0 0
      %285 = vperm.xlu0 %284, %v282
      %v286 = vpop.permute.xlu0 %285
      %vm288 = vcmask 523264
      %v290 = vsel %vm288, %v265, 0
      %292 = vmatprep.subr.mxu0 %v267
      %293 = vmatpush1.msra.mxu0 %v266
      %294 = vmatprep.subr.mxu0 %v269
      %295 = vmatpush1.msra.mxu0 %v268
      %296 = vmatprep.subr.mxu0 %v271
      %297 = vmatpush1.msra.mxu0 %v270
      %298 = vmatprep.subr.mxu0 %v273
      %299 = vmatpush1.msra.mxu0 %v272
      %300 = vmatprep.subr.mxu0 %v275
      %301 = vmatpush1.msra.mxu0 %v274
      %302 = vmatprep.subr.mxu0 %v277
      %303 = vmatpush1.msra.mxu0 %v276
      %304 = vmatprep.subr.mxu0 %v279
      %305 = vmatpush1.msra.mxu0 %v278
      %306 = vmatprep.subr.mxu0 %v281
      %307 = vmatpush1.msra.mxu0 %v280
      %308 = vmatprep.subr.mxu0 0.0
      %309 = vmatpush1.msra.mxu0 0.0
      %310 = vmatprep.subr.mxu0 0.0
      %311 = vmatpush1.msra.mxu0 0.0
      %312 = vmatprep.subr.mxu0 0.0
      %313 = vmatpush1.msra.mxu0 0.0
      %314 = vmatprep.subr.mxu0 0.0
      %315 = vmatpush1.msra.mxu0 0.0
      %316 = vmatprep.subr.mxu0 0.0
      %317 = vmatpush1.msra.mxu0 0.0
      %318 = vmatprep.subr.mxu0 0.0
      %319 = vmatpush1.msra.mxu0 0.0
      %320 = vmatprep.subr.mxu0 0.0
      %321 = vmatpush1.msra.mxu0 0.0
      %322 = vmatprep.subr.mxu0 0.0
      %323 = vmatpush1.msra.mxu0 0.0
      %324 = vmatprep.subr.mxu0 0.0
      %325 = vmatpush1.msra.mxu0 0.0
      %326 = vmatprep.subr.mxu0 0.0
      %327 = vmatpush1.msra.mxu0 0.0
      %328 = vmatprep.subr.mxu0 0.0
      %329 = vmatpush1.msra.mxu0 0.0
      %330 = vmatprep.subr.mxu0 0.0
      %331 = vmatpush1.msra.mxu0 0.0
      %332 = vmatprep.subr.mxu0 0.0
      %333 = vmatpush1.msra.mxu0 0.0
      %334 = vmatprep.subr.mxu0 0.0
      %335 = vmatpush1.msra.mxu0 0.0
      %336 = vmatprep.subr.mxu0 0.0
      %337 = vmatpush1.msra.mxu0 0.0
      %338 = vmatprep.subr.mxu0 0.0
      %339 = vmatpush1.msra.mxu0 0.0
      %340 = vmatprep.subr.mxu0 0.0
      %341 = vmatpush1.msra.mxu0 0.0
      %342 = vmatprep.subr.mxu0 0.0
      %343 = vmatpush1.msra.mxu0 0.0
      %344 = vmatprep.subr.mxu0 0.0
      %345 = vmatpush1.msra.mxu0 0.0
      %346 = vmatprep.subr.mxu0 0.0
      %347 = vmatpush1.msra.mxu0 0.0
      %348 = vmatprep.subr.mxu0 0.0
      %349 = vmatpush1.msra.mxu0 0.0
      %350 = vmatprep.subr.mxu0 0.0
      %351 = vmatpush1.msra.mxu0 0.0
      %352 = vmatprep.subr.mxu0 0.0
      %353 = vmatpush1.msra.mxu0 0.0
      %354 = vmatprep.subr.mxu0 0.0
      %355 = vmatpush1.msra.mxu0 0.0
      %356 = vmatprep.mubr.f32.mxu0 0.0
      %357 = vmatmul.mubr.f32.gmra.mrb[0].mxu0 %v290
      %v358 = vpop.f32.mrb[0].mxu0
      %v359 = vadd.f32 %v286, %v358
      %v360 = vpop.f32.mrb[0].mxu0
      %v361 = vadd.f32 %v286, %v360
      %362 = vdwg.mxu0
      %v363 = vmax.f32 %v359, 0.0
      %v364 = vmax.f32 %v361, 0.0
      %v365 = vld [vmem:[%s3] sm:$0xff]
      %367 = vset.pattern.permute.xlu0 0
      %368 = vperm.xlu0 %367, %v365
      %v369 = vpop.permute.xlu0 %368
      %v371 = vmul.f32 %v363, %v369
      %v372 = vmul.f32 %v364, %v369
      %v373 = vrot.slane %v371, 4
      %v374 = vadd.f32 %v371, %v373
      %v375 = vrot.slane %v374, 2
      %v376 = vadd.f32 %v374, %v375
      %v377 = vrot.slane %v376, 1
      %v378 = vadd.f32 %v376, %v377
      %v379 = vrot.slane %v372, 4
      %v380 = vadd.f32 %v372, %v379
      %v381 = vrot.slane %v380, 2
      %v382 = vadd.f32 %v380, %v381
      %v383 = vrot.slane %v382, 1
      %v384 = vadd.f32 %v382, %v383
      %s385 = sld [smem:[#allocation2]]
      %v386 = vstv %s385
      %v387 = vadd.f32 %v378, %v386
      %v388 = vadd.f32 %v384, %v386
      %v389 = vxor.u32 %v387, 2147483648
      %v390 = vxor.u32 %v388, 2147483648
      %v391 = vmul.f32 %v389, 1.442695
      %v392 = vpow.pop %v391
      %v393 = vmul.f32 %v390, 1.442695
      %v394 = vpow.pop %v393
      %v395 = vadd.f32 %v392, 1.0
      %v396 = vadd.f32 %v394, 1.0
      %v397 = vrcp.pop %v395
      %v398 = vmul.f32 1.0, %v397
      %v399 = vrcp.pop %v396
      %v400 = vmul.f32 1.0, %v399
      %v401 = vmul.f32 %v266, %v398
      %v402 = vmul.f32 %v267, %v400
      %v403 = vmul.f32 %v268, %v398
      %v404 = vmul.f32 %v269, %v400
      %v405 = vmul.f32 %v270, %v398
      %v406 = vmul.f32 %v271, %v400
      %v407 = vmul.f32 %v272, %v398
      %v408 = vmul.f32 %v273, %v400
      %v409 = vmul.f32 %v274, %v398
      %v410 = vmul.f32 %v275, %v400
      %v411 = vmul.f32 %v276, %v398
      %v412 = vmul.f32 %v277, %v400
      %v413 = vmul.f32 %v278, %v398
      %v414 = vmul.f32 %v279, %v400
      %v415 = vmul.f32 %v280, %v398
      %v416 = vmul.f32 %v281, %v400
      %417 = vst [vmem:[%s263] sm:$0xff] %v401
      %418 = vst [vmem:[%s263 + $0x8] sm:$0xff] %v402
      %419 = vst [vmem:[%s263 + $0x10] sm:$0xff] %v403
      %420 = vst [vmem:[%s263 + $0x18] sm:$0xff] %v404
      %421 = vst [vmem:[%s263 + $0x20] sm:$0xff] %v405
      %422 = vst [vmem:[%s263 + $0x28] sm:$0xff] %v406
      %423 = vst [vmem:[%s263 + $0x30] sm:$0xff] %v407
      %424 = vst [vmem:[%s263 + $0x38] sm:$0xff] %v408
      %425 = vst [vmem:[%s263 + $0x40] sm:$0xff] %v409
      %426 = vst [vmem:[%s263 + $0x48] sm:$0xff] %v410
      %427 = vst [vmem:[%s263 + $0x50] sm:$0xff] %v411
      %428 = vst [vmem:[%s263 + $0x58] sm:$0xff] %v412
      %429 = vst [vmem:[%s263 + $0x60] sm:$0xff] %v413
      %430 = vst [vmem:[%s263 + $0x68] sm:$0xff] %v414
      %431 = vst [vmem:[%s263 + $0x70] sm:$0xff] %v415
      %432 = vst [vmem:[%s263 + $0x78] sm:$0xff] %v416
      %s433 = smul.u32 2, %s22
      %p434 = scmp.lt.s32.totalorder %s21, 1
      %s435 = scalar_select %p434, %s21, 1
      %p436 = scmp.lt.s32.totalorder %s433, 1
      %s437 = scalar_select %p436, %s433, 1
      %s438 = smul.addr %s435, 16
      %s439 = sadd.s32 %s437, %s438
      %s440 = smul.addr %s439, 8
      %s441 = scalar_lea.vmem %s5, %s440
      // Predicated region
      $region41: #{pa_layer.1} parent=39 // pred_check
        %p442 = pneg %p161
      $region42: #{pa_layer.1} parent=39 // pred_check_branch
        %444 = sbr.rel (%p442) target = $region44
      $region43: #{pa_layer.1} parent=39 // pred_region
        %s445 = smul.u32 2, %s22
      $region44: #{pa_layer.1} parent=39 // pred_fallthru
        _
    $region40: #{pa_layer.1} parent=5 // pred_fallthru
      _
    %p446 = scmp.le.s32.totalorder 2, %s12
    // Predicated region
    $region45: #{pa_layer.1} parent=5 // pred_check
      %p447 = pneg %p446
    $region46: #{pa_layer.1} parent=5 // pred_check_branch
      %449 = sbr.rel (%p447) target = $region48
    $region47: #{pa_layer.1} parent=5 // pred_region
      %s450 = ssub.s32 %s12, 2
      // Predicated region
      $region49: #{pa_layer.1} parent=47 // pred_check
        %p451 = pneg %p167
      $region50: #{pa_layer.1} parent=47 // pred_check_branch
        %453 = sbr.rel (%p451) target = $region52
      $region51: #{pa_layer.1} parent=47 // pred_region
        %s454 = smul.u32 2, %s24
        %p455 = scmp.lt.s32.totalorder %s23, 1
        %s456 = scalar_select %p455, %s23, 1
        %p457 = scmp.lt.s32.totalorder %s454, 1
        %s458 = scalar_select %p457, %s454, 1
        %s459 = smul.addr %s456, 16
        %s460 = sadd.s32 %s458, %s459
        %s461 = smul.addr %s460, 8
        %s462 = scalar_lea.vmem %s5, %s461
      $region52: #{pa_layer.1} parent=47 // pred_fallthru
        _
    $region48: #{pa_layer.1} parent=5 // pred_fallthru
      _
  $region6: #{pa_layer.1} parent=0 // loop_footer
    %s16 = sadd.s32 1, %s12
  $region7: #{pa_layer.1} parent=0 // loop_footer_branch
    %11 = sbr.rel target = $region3
  $region8: #{pa_layer.1} parent=0 // loop_exit
    _

</llo_original>
